<compile_context>
chip_gen: v5e
topology: v5e:2x2
jax: 0.10.0
libtpu: 0.0.40
codegen_flags: <defaults>
</compile_context>

<pallas_src>
import jax
import jax.numpy as jnp
from jax.experimental import pallas as pl
from jax.experimental.pallas import tpu as pltpu


def _round_up(x, m):
    return (x + m - 1) // m * m


def _vmem_capacity_bytes():
    try:
        return int(pltpu.get_tpu_info().vmem_capacity_bytes)
    except Exception:
        return 64 * 1024 * 1024          # conservative fallback (v7x per-TensorCore VMEM)


def autoencoder_kernel(x_ref, we_ref, be_ref, wd_ref, bd_ref, o_ref,
                       acc_ref, h_ref):
    # Grid: (batch tiles, 2 * num_d_tiles).  Second axis is "arbitrary":
    #   d <  n_d : encoder accumulation over D tiles
    #   d >= n_d : decoder, one output D tile per step
    #
    # x_ref:  (TM, TD)          activation tile (weight dtype, e.g. bf16)
    # we_ref: (TD, HID_pad)     encoder weight slab
    # be_ref: (1, HID_pad)      encoder bias (f32)
    # wd_ref: (HID_pad, TD)     decoder weight slab
    # bd_ref: (1, TD)           decoder bias slab (f32)
    # o_ref:  (TM, TD)          reconstructed output slab (f32)
    # acc_ref:(TM, HID_pad) f32 encoder accumulator (scratch)
    # h_ref:  (TM, HID_pad)     post-ReLU hidden activations (scratch, weight dtype)
    d = pl.program_id(1)
    n_d = pl.num_programs(1) // 2

    @pl.when(d < n_d)
    def _encode():
        @pl.when(d == 0)
        def _init():
            acc_ref[...] = jnp.zeros_like(acc_ref)

        acc_ref[...] += jnp.dot(x_ref[...], we_ref[...],
                                preferred_element_type=jnp.float32)

        @pl.when(d == n_d - 1)
        def _finalize():
            # f32 bias + ReLU epilogue, store hidden at the MXU dtype for the decoder.
            h_ref[...] = jnp.maximum(acc_ref[...] + be_ref[...], 0.0).astype(h_ref.dtype)

    @pl.when(d >= n_d)
    def _decode():
        y = jnp.dot(h_ref[...], wd_ref[...], preferred_element_type=jnp.float32)
        o_ref[...] = (y + bd_ref[...]).astype(o_ref.dtype)


def prepare_autoencoder_params(w_enc, b_enc, w_dec, b_dec, *,
                               weight_dtype=jnp.bfloat16):
    """Pad + cast the parameters once (hoisted out of the per-call path)."""
    D, HID = w_enc.shape
    w_item = jnp.dtype(weight_dtype).itemsize
    act_item = w_item                       # activations stream at the weight dtype
    hid_pad = _round_up(HID, 128)

    vmem_cap = _vmem_capacity_bytes()
    tm_cap = 256 if vmem_cap >= (96 << 20) else 128   # bigger batch tiles on 128 MiB parts

    # Pick the feature(D)-tile so the per-step working set fits ~70% of VMEM,
    # assuming the largest batch tile we will ever choose.
    def working_set(td, tm):
        return (2 * tm * td * act_item            # x tile (double buffered)
                + 2 * tm * td * 4                 # out tile (double buffered, f32)
                + 2 * td * hid_pad * w_item       # encoder weight slab (double buffered)
                + 2 * hid_pad * td * w_item       # decoder weight slab (double buffered)
                + 2 * (td + hid_pad) * 4          # bias tiles
                + tm * hid_pad * 4                # f32 encoder accumulator scratch
                + tm * hid_pad * act_item)        # hidden activation scratch

    td = _round_up(D, 128)
    budget = int(0.70 * vmem_cap)
    while td > 128 and working_set(td, tm_cap) > budget:
        td = _round_up(td // 2, 128)
    # TODO(synk): if working_set(128, tm_cap) still exceeds budget (huge HID), add an
    # HID-tiling grid axis as well.

    d_pad = _round_up(D, td)

    if (d_pad, hid_pad) == (D, HID):
        # Fast path: no padded copies at all.
        we_p = w_enc.astype(weight_dtype)
        wd_p = w_dec.astype(weight_dtype)
        be_p = b_enc.reshape(1, HID).astype(jnp.float32)
        bd_p = b_dec.reshape(1, D).astype(jnp.float32)
    else:
        we_p = jnp.zeros((d_pad, hid_pad), weight_dtype).at[:D, :HID].set(
            w_enc.astype(weight_dtype))
        wd_p = jnp.zeros((hid_pad, d_pad), weight_dtype).at[:HID, :D].set(
            w_dec.astype(weight_dtype))
        be_p = jnp.zeros((1, hid_pad), jnp.float32).at[0, :HID].set(
            b_enc.astype(jnp.float32))
        bd_p = jnp.zeros((1, d_pad), jnp.float32).at[0, :D].set(
            b_dec.astype(jnp.float32))

    return dict(we=we_p, be=be_p, wd=wd_p, bd=bd_p,
                D=D, HID=HID, D_pad=d_pad, HID_pad=hid_pad, TD=td,
                weight_dtype=weight_dtype, vmem_cap=vmem_cap, tm_cap=tm_cap)


def autoencoder_apply(x_nchw, params):
    """x_nchw: (B, C, H, W) float32 -> reconstruction of the same shape (float32)."""
    B, C, H, W = x_nchw.shape
    D = C * H * W
    assert D == params["D"], "input feature size mismatch with prepared parameters"

    w_dtype = params["weight_dtype"]
    w_item = jnp.dtype(w_dtype).itemsize
    act_dtype = w_dtype
    act_item = w_item
    D_pad, HID_pad, TD = params["D_pad"], params["HID_pad"], params["TD"]
    HID = params["HID"]
    vmem_cap, tm_cap = params["vmem_cap"], params["tm_cap"]

    # ---- batch tile: multiple of the sublane pack (8 f32 / 16 bf16); aim for >= 2
    # tiles so the "parallel" batch axis can span both TensorCores on v7x. ----------
    sub = 8 * (4 // act_item)
    b_min = _round_up(B, sub)
    if b_min >= 2 * sub:
        tm = min(tm_cap, max(sub, _round_up((b_min + 1) // 2, sub)))
    else:
        tm = b_min
    B_pad = _round_up(B, tm)
    num_b = B_pad // tm
    n_d = D_pad // TD

    # ---- activations: flatten, cast to the MXU dtype in the wrapper, pad only if
    # needed (skip the extra HBM copy when shapes already align). -------------------
    x_flat = x_nchw.reshape(B, D)
    if (B_pad, D_pad) == (B, D):
        x_p = x_flat.astype(act_dtype)
    else:
        x_p = jnp.zeros((B_pad, D_pad), act_dtype).at[:B, :D].set(
            x_flat.astype(act_dtype))

    # ---- VMEM budget: real footprint + ~25% headroom, capped at capacity ----------
    working_set = (2 * tm * TD * act_item + 2 * tm * TD * 4
                   + 2 * TD * HID_pad * w_item + 2 * HID_pad * TD * w_item
                   + 2 * (TD + HID_pad) * 4
                   + tm * HID_pad * 4 + tm * HID_pad * act_item)
    vmem_limit = int(min(vmem_cap, max(16 << 20, int(working_set * 1.25) + (2 << 20))))

    cost = pl.CostEstimate(
        flops=2 * 2 * B * D * HID,                       # two matmuls, true dims
        transcendentals=0,
        bytes_accessed=(B * D * (act_item + 4)           # x in + f32 out
                        + 2 * D * HID * w_item           # both weights
                        + (D + HID) * 4),                # biases
    )

    out_flat = pl.pallas_call(
        autoencoder_kernel,
        out_shape=jax.ShapeDtypeStruct((B_pad, D_pad), jnp.float32),
        grid=(num_b, 2 * n_d),
        in_specs=[
            # x: batch-tiled, streamed over D tiles in phase 0, held in phase 1.
            pl.BlockSpec((tm, TD), lambda b, d: (b, jnp.minimum(d, n_d - 1))),
            # encoder weight: streamed over D tiles in phase 0, held in phase 1.
            pl.BlockSpec((TD, HID_pad), lambda b, d: (jnp.minimum(d, n_d - 1), 0)),
            # encoder bias: grid-invariant.
            pl.BlockSpec((1, HID_pad), lambda b, d: (0, 0)),
            # decoder weight: held in phase 0, streamed over D tiles in phase 1.
            pl.BlockSpec((HID_pad, TD), lambda b, d: (0, jnp.maximum(d - n_d, 0))),
            # decoder bias: streamed with the output tile.
            pl.BlockSpec((1, TD), lambda b, d: (0, jnp.maximum(d - n_d, 0))),
        ],
        out_specs=pl.BlockSpec((tm, TD), lambda b, d: (b, jnp.maximum(d - n_d, 0))),
        scratch_shapes=[
            pltpu.VMEM((tm, HID_pad), jnp.float32),      # encoder f32 accumulator
            pltpu.VMEM((tm, HID_pad), w_dtype),          # hidden activations (post-ReLU)
        ],
        compiler_params=pltpu.CompilerParams(
            dimension_semantics=("parallel", "arbitrary"),
            vmem_limit_bytes=vmem_limit,
        ),
        cost_estimate=cost,
    )(x_p, params["we"], params["be"], params["wd"], params["bd"])

    return out_flat[:B, :D].reshape(B, C, H, W)


def autoencoder_forward(x_nchw, w_enc, b_enc, w_dec, b_dec, *,
                        weight_dtype=jnp.bfloat16):
    """Convenience one-shot wrapper (prepare + apply). Prefer preparing params once."""
    params = prepare_autoencoder_params(w_enc, b_enc, w_dec, b_dec,
                                        weight_dtype=weight_dtype)
    return autoencoder_apply(x_nchw, params)


def _reference_forward(x_nchw, w_enc, b_enc, w_dec, b_dec, *,
                       weight_dtype=jnp.bfloat16):
    """Pure-JAX reference matching the kernel semantics (same casts, f32 accumulation)."""
    B = x_nchw.shape[0]
    wt = jnp.dtype(weight_dtype)
    x_flat = x_nchw.reshape(B, -1).astype(wt)
    h = jnp.dot(x_flat, w_enc.astype(wt), preferred_element_type=jnp.float32)
    h = jnp.maximum(h + b_enc, 0.0)
    y = jnp.dot(h.astype(wt), w_dec.astype(wt), preferred_element_type=jnp.float32)
    y = y + b_dec
    return y.reshape(x_nchw.shape)


if __name__ == "__main__":
    # Small deterministic setup: batch=2, channels=4, spatial=16x16, hidden=32.
    B, C, H, W = 2, 4, 16, 16
    D = C * H * W
    HID = 32

    key = jax.random.PRNGKey(0)
    kx, k1, k2, k3, k4 = jax.random.split(key, 5)

    x = jax.random.normal(kx, (B, C, H, W), dtype=jnp.float32)
    w_enc = jax.random.normal(k1, (D, HID), dtype=jnp.float32) * (1.0 / jnp.sqrt(D))
    b_enc = jax.random.normal(k2, (HID,),   dtype=jnp.float32) * 0.01
    w_dec = jax.random.normal(k3, (HID, D), dtype=jnp.float32) * (1.0 / jnp.sqrt(HID))
    b_dec = jax.random.normal(k4, (D,),     dtype=jnp.float32) * 0.01

    # --- f32 weight/activation path (strict numerical check) ----------------------
    params_f32 = prepare_autoencoder_params(w_enc, b_enc, w_dec, b_dec,
                                            weight_dtype=jnp.float32)
    out_f32 = jax.block_until_ready(autoencoder_apply(x, params_f32))
    ref_f32 = _reference_forward(x, w_enc, b_enc, w_dec, b_dec,
                                 weight_dtype=jnp.float32)
    assert out_f32.shape == (B, C, H, W)
    assert jnp.allclose(out_f32, ref_f32, atol=2e-4, rtol=2e-4), "f32 mismatch vs reference"

    # --- default bf16 path (bf16 weights + bf16 activation streams, f32 accum) ----
    params_bf16 = prepare_autoencoder_params(w_enc, b_enc, w_dec, b_dec,
                                             weight_dtype=jnp.bfloat16)
    out_bf16 = jax.block_until_ready(autoencoder_apply(x, params_bf16))
    ref_bf16 = _reference_forward(x, w_enc, b_enc, w_dec, b_dec,
                                  weight_dtype=jnp.bfloat16)
    assert out_bf16.shape == (B, C, H, W)
    assert jnp.allclose(out_bf16, ref_bf16, atol=2e-2, rtol=2e-2), "bf16 mismatch vs reference"

    print("KERNEL_OK")
</pallas_src>

<mosaic_0001>
module attributes {stable_mosaic.version = 11 : i64} {
  func.func @autoencoder_kernel(%arg0: i32, %arg1: i32, %arg2: memref<8x1024xf32, #tpu.memory_space<vmem>>, %arg3: memref<1024x128xf32, #tpu.memory_space<vmem>>, %arg4: memref<1x128xf32, #tpu.memory_space<vmem>>, %arg5: memref<128x1024xf32, #tpu.memory_space<vmem>>, %arg6: memref<1x1024xf32, #tpu.memory_space<vmem>>, %arg7: memref<8x1024xf32, #tpu.memory_space<vmem>>, %arg8: memref<8x128xf32, #tpu.memory_space<vmem>>, %arg9: memref<8x128xf32, #tpu.memory_space<vmem>>) attributes {dimension_semantics = [#tpu.dimension_semantics<parallel>, #tpu.dimension_semantics<arbitrary>], iteration_bounds = array<i64: 1, 2>, scalar_prefetch = 0 : i64, scratch_operands = 2 : i64, tpu.core_type = #tpu.core_type<tc>, window_params = [{transform_indices = @transform_0, window_bounds = array<i64: 8, 1024>}, {transform_indices = @transform_1, window_bounds = array<i64: 1024, 128>}, {pipeline_mode = #tpu.pipeline_mode<synchronous>, transform_indices = @transform_2, window_bounds = array<i64: 1, 128>}, {transform_indices = @transform_3, window_bounds = array<i64: 128, 1024>}, {transform_indices = @transform_4, window_bounds = array<i64: 1, 1024>}, {transform_indices = @transform_5, window_bounds = array<i64: 8, 1024>}]} {
    %c1_i32 = arith.constant 1 : i32
    %0 = arith.cmpi slt, %arg1, %c1_i32 : i32
    %1 = arith.extui %0 : i1 to i32
    %c0_i32 = arith.constant 0 : i32
    %2 = arith.cmpi ne, %1, %c0_i32 : i32
    scf.if %2 {
      %c0_i32_2 = arith.constant 0 : i32
      %6 = arith.cmpi eq, %arg1, %c0_i32_2 : i32
      %7 = arith.extui %6 : i1 to i32
      %c0_i32_3 = arith.constant 0 : i32
      %8 = arith.cmpi ne, %7, %c0_i32_3 : i32
      scf.if %8 {
        %cst_13 = arith.constant 0.000000e+00 : f32
        %18 = vector.broadcast %cst_13 : f32 to vector<8x128xf32>
        %c0_14 = arith.constant 0 : index
        %c0_15 = arith.constant 0 : index
        %19 = vector.load %arg8[%c0_14, %c0_15] : memref<8x128xf32, #tpu.memory_space<vmem>>, vector<8x128xf32>
        tpu.vector_store %arg8[%c0_14, %c0_15], %18 {strides = array<i32>} : memref<8x128xf32, #tpu.memory_space<vmem>>, vector<8x128xf32>,
      } else {
      }
      %c0 = arith.constant 0 : index
      %c0_4 = arith.constant 0 : index
      %9 = vector.load %arg8[%c0, %c0_4] : memref<8x128xf32, #tpu.memory_space<vmem>>, vector<8x128xf32>
      %c0_5 = arith.constant 0 : index
      %c0_6 = arith.constant 0 : index
      %10 = vector.load %arg2[%c0_5, %c0_6] : memref<8x1024xf32, #tpu.memory_space<vmem>>, vector<8x1024xf32>
      %c0_7 = arith.constant 0 : index
      %c0_8 = arith.constant 0 : index
      %11 = vector.load %arg3[%c0_7, %c0_8] : memref<1024x128xf32, #tpu.memory_space<vmem>>, vector<1024x128xf32>
      %cst = arith.constant dense<0.000000e+00> : vector<8x128xf32>
      %12 = tpu.matmul %10, %11, %cst {dimension_numbers = #tpu.dot_dimension_numbers<[1], [0], [0], [1], [0, 0, 1, 1], [], []>} : vector<8x1024xf32>, vector<1024x128xf32>, vector<8x128xf32> -> vector<8x128xf32>
      %13 = arith.addf %9, %12 : vector<8x128xf32>
      %c0_9 = arith.constant 0 : index
      %c0_10 = arith.constant 0 : index
      %14 = vector.load %arg8[%c0_9, %c0_10] : memref<8x128xf32, #tpu.memory_space<vmem>>, vector<8x128xf32>
      tpu.vector_store %arg8[%c0_9, %c0_10], %13 {strides = array<i32>} : memref<8x128xf32, #tpu.memory_space<vmem>>, vector<8x128xf32>,
      %c0_i32_11 = arith.constant 0 : i32
      %15 = arith.cmpi eq, %arg1, %c0_i32_11 : i32
      %16 = arith.extui %15 : i1 to i32
      %c0_i32_12 = arith.constant 0 : i32
      %17 = arith.cmpi ne, %16, %c0_i32_12 : i32
      scf.if %17 {
        %c0_13 = arith.constant 0 : index
        %c0_14 = arith.constant 0 : index
        %18 = vector.load %arg8[%c0_13, %c0_14] : memref<8x128xf32, #tpu.memory_space<vmem>>, vector<8x128xf32>
        %c0_15 = arith.constant 0 : index
        %c0_16 = arith.constant 0 : index
        %19 = vector.load %arg4[%c0_15, %c0_16] : memref<1x128xf32, #tpu.memory_space<vmem>>, vector<1x128xf32>
        %20 = vector.broadcast %19 : vector<1x128xf32> to vector<8x128xf32>
        %21 = arith.addf %18, %20 : vector<8x128xf32>
        %cst_17 = arith.constant 0.000000e+00 : f32
        %22 = vector.broadcast %cst_17 : f32 to vector<8x128xf32>
        %23 = arith.maximumf %21, %22 : vector<8x128xf32>
        %c0_18 = arith.constant 0 : index
        %c0_19 = arith.constant 0 : index
        %24 = vector.load %arg9[%c0_18, %c0_19] : memref<8x128xf32, #tpu.memory_space<vmem>>, vector<8x128xf32>
        tpu.vector_store %arg9[%c0_18, %c0_19], %23 {strides = array<i32>} : memref<8x128xf32, #tpu.memory_space<vmem>>, vector<8x128xf32>,
      } else {
      }
    } else {
    }
    %c1_i32_0 = arith.constant 1 : i32
    %3 = arith.cmpi sge, %arg1, %c1_i32_0 : i32
    %4 = arith.extui %3 : i1 to i32
    %c0_i32_1 = arith.constant 0 : i32
    %5 = arith.cmpi ne, %4, %c0_i32_1 : i32
    scf.if %5 {
      %c0 = arith.constant 0 : index
      %c0_2 = arith.constant 0 : index
      %6 = vector.load %arg9[%c0, %c0_2] : memref<8x128xf32, #tpu.memory_space<vmem>>, vector<8x128xf32>
      %c0_3 = arith.constant 0 : index
      %c0_4 = arith.constant 0 : index
      %7 = vector.load %arg5[%c0_3, %c0_4] : memref<128x1024xf32, #tpu.memory_space<vmem>>, vector<128x1024xf32>
      %cst = arith.constant dense<0.000000e+00> : vector<8x1024xf32>
      %8 = tpu.matmul %6, %7, %cst {dimension_numbers = #tpu.dot_dimension_numbers<[1], [0], [0], [1], [0, 0, 1, 1], [], []>} : vector<8x128xf32>, vector<128x1024xf32>, vector<8x1024xf32> -> vector<8x1024xf32>
      %c0_5 = arith.constant 0 : index
      %c0_6 = arith.constant 0 : index
      %9 = vector.load %arg6[%c0_5, %c0_6] : memref<1x1024xf32, #tpu.memory_space<vmem>>, vector<1x1024xf32>
      %10 = vector.broadcast %9 : vector<1x1024xf32> to vector<8x1024xf32>
      %11 = arith.addf %8, %10 : vector<8x1024xf32>
      %c0_7 = arith.constant 0 : index
      %c0_8 = arith.constant 0 : index
      %12 = vector.load %arg7[%c0_7, %c0_8] : memref<8x1024xf32, #tpu.memory_space<vmem>>, vector<8x1024xf32>
      tpu.vector_store %arg7[%c0_7, %c0_8], %11 {strides = array<i32>} : memref<8x1024xf32, #tpu.memory_space<vmem>>, vector<8x1024xf32>,
    } else {
    }
    return
  }
  func.func @transform_0(%arg0: i32, %arg1: i32) -> (i32, i32) {
    %c0_i32 = arith.constant 0 : i32
    %0 = arith.minsi %arg1, %c0_i32 : i32
    %c0_i32_0 = arith.constant 0 : i32
    return %arg0, %0 : i32, i32
  }
  func.func @transform_1(%arg0: i32, %arg1: i32) -> (i32, i32) {
    %c0_i32 = arith.constant 0 : i32
    %0 = arith.minsi %arg1, %c0_i32 : i32
    %c0_i32_0 = arith.constant 0 : i32
    %c0_i32_1 = arith.constant 0 : i32
    return %0, %c0_i32_0 : i32, i32
  }
  func.func @transform_2(%arg0: i32, %arg1: i32) -> (i32, i32) {
    %c0_i32 = arith.constant 0 : i32
    %c0_i32_0 = arith.constant 0 : i32
    %c0_i32_1 = arith.constant 0 : i32
    return %c0_i32, %c0_i32_0 : i32, i32
  }
  func.func @transform_3(%arg0: i32, %arg1: i32) -> (i32, i32) {
    %c1_i32 = arith.constant 1 : i32
    %0 = arith.subi %arg1, %c1_i32 : i32
    %c0_i32 = arith.constant 0 : i32
    %1 = arith.maxsi %0, %c0_i32 : i32
    %c0_i32_0 = arith.constant 0 : i32
    %c0_i32_1 = arith.constant 0 : i32
    return %c0_i32_0, %1 : i32, i32
  }
  func.func @transform_4(%arg0: i32, %arg1: i32) -> (i32, i32) {
    %c1_i32 = arith.constant 1 : i32
    %0 = arith.subi %arg1, %c1_i32 : i32
    %c0_i32 = arith.constant 0 : i32
    %1 = arith.maxsi %0, %c0_i32 : i32
    %c0_i32_0 = arith.constant 0 : i32
    %c0_i32_1 = arith.constant 0 : i32
    return %c0_i32_0, %1 : i32, i32
  }
  func.func @transform_5(%arg0: i32, %arg1: i32) -> (i32, i32) {
    %c1_i32 = arith.constant 1 : i32
    %0 = arith.subi %arg1, %c1_i32 : i32
    %c0_i32 = arith.constant 0 : i32
    %1 = arith.maxsi %0, %c0_i32 : i32
    %c0_i32_0 = arith.constant 0 : i32
    return %arg0, %1 : i32, i32
  }
}

</mosaic_0001>

<llo_original>
// kernel: tpu_custom_call.1
$region0: #{tpu_custom_call.1}
  #allocation0 [shape = 'u32[]', space=smem, size = 0x4, offset = 0x4, fixed_abs, tag = 'smem constant byte address 0x4 - core index']
  #allocation1 [shape = 'u32[72,128]{1,0:T(1,128)}', space=vmem, size = 0x9000, scoped, tag = 'internal scratch']
  #allocation2 [shape = 'f32[8,128]{1,0:T(8,128)}', space=vmem, size = 0x1000, scoped, tag = 'scratch operand']
  #allocation3 [shape = 'f32[8,128]{1,0:T(8,128)}', space=vmem, size = 0x1000, scoped, tag = 'scratch operand']
  %s0 = inlined_call_operand.hbm [shape: f32[8,1024], index: 0, kind: input, shape index: {}]
  %s1 = inlined_call_operand.hbm [shape: f32[1024,128], index: 1, kind: input, shape index: {}]
  %s2 = inlined_call_operand.vmem [shape: f32[1,128], index: 2, kind: input, shape index: {}]
  %s3 = inlined_call_operand.hbm [shape: f32[128,1024], index: 3, kind: input, shape index: {}]
  %s4 = inlined_call_operand.hbm [shape: f32[1,1024], index: 4, kind: input, shape index: {}]
  %s5 = inlined_call_operand.hbm [shape: f32[8,1024], index: 5, kind: output, shape index: {}]
  %s6 = sld [smem:[#allocation0]]
  $region85: #{tpu_custom_call.1} parent=0
    _
  %s8 = ssub.s32 1, %s6
  %s9 = scalar_select 0, %s8, %s6
  $region1: #{tpu_custom_call.1} parent=0
    #allocation4 [shape = 'u8[65536]{0}', space=vmem, size = 0x10000, scoped, tag = 'input window, operand 0']
    #allocation5 [shape = 's32[2]{0}', space=sflag, size = 0x8, scoped, tag = 'scoped memory for tpu_custom_call.1']
    #allocation6 [shape = 's32[2]{0}', space=sflag, size = 0x8, scoped, tag = 'scoped memory for tpu_custom_call.1']
    #allocation7 [shape = 'u8[1048576]{0}', space=vmem, size = 0x100000, scoped, tag = 'input window, operand 1']
    #allocation8 [shape = 's32[2]{0}', space=sflag, size = 0x8, scoped, tag = 'scoped memory for tpu_custom_call.1']
    #allocation9 [shape = 'u8[1048576]{0}', space=vmem, size = 0x100000, scoped, tag = 'input window, operand 3']
    #allocation10 [shape = 'u8[8192]{0}', space=vmem, size = 0x2000, scoped, tag = 'input window, operand 4']
    #allocation11 [shape = 's32[2]{0}', space=sflag, size = 0x8, scoped, tag = 'scoped memory for tpu_custom_call.1']
    #allocation12 [shape = 'u8[65536]{0}', space=vmem, size = 0x10000, scoped, tag = 'output window, operand 0']
    %10 = vsyncpa [#allocation5], 0
    %s11 = scalar_lea.sflag [#allocation5], 1
    %12 = vsyncpa %s11, 0
    %13 = vsyncpa [#allocation8], 0
    %s14 = scalar_lea.sflag [#allocation8], 1
    %15 = vsyncpa %s14, 0
    %16 = vsyncpa [#allocation11], 0
    %s17 = scalar_lea.sflag [#allocation11], 1
    %18 = vsyncpa %s17, 0
    %19 = vsyncpa [#allocation6], 0
    %s20 = scalar_lea.sflag [#allocation6], 1
    %21 = vsyncpa %s20, 0
    loop: start=0, step=1, limit=4
    $region2: #{tpu_custom_call.1} parent=1 // loop_pre_header
      _
    $region3: #{tpu_custom_call.1} parent=1 // loop_header
      %s23 = sphi 0, %s27
      %p24 = scmp.ge.s32.totalorder %s23, 4
      %s30 = sphi 0, %s42
      %s31 = sphi 0, %s38
      %s32 = sphi 0, %s30
      %s33 = sphi 0, %s31
      %s34 = sphi 0, %s32
      %s35 = sphi 0, %s33
      %s51 = sphi 0, %s53
      %s54 = sphi 0, %s51
      %s55 = sphi 0, %s54
      %s71 = sphi 0, %s55
      %s81 = sphi 0, %s83
      %s84 = sphi 0, %s81
      %s85 = sphi 0, %s84
      %s101 = sphi 0, %s85
      %s105 = sphi 0, %s105
      %s107 = sphi 0, %s105
      %s108 = sphi 0, %s107
      %s122 = sphi 0, %s108
      %s134 = sphi 0, %s136
      %s137 = sphi 0, %s134
      %s138 = sphi 0, %s137
      %s154 = sphi 0, %s138
      %s166 = sphi 0, %s168
      %s169 = sphi 0, %s166
      %s170 = sphi 0, %s169
      %s186 = sphi 0, %s170
      %s200 = sphi 0, %s202
      %s203 = sphi 0, %s200
      %s204 = sphi 0, %s203
      %s220 = sphi 0, %s204
    $region4: #{tpu_custom_call.1} parent=1 // loop_header_branch
      %26 = sbr.rel (%p24) target = $region8
    $region5: #{tpu_custom_call.1} parent=1 // loop_body
      %s28 = ssub.s32 %s23, 1
      %s29 = ssub.s32 %s23, 2
      %s36 = sadd.s32 1, %s31
      %p37 = scmp.ge.s32.totalorder %s36, 2
      %s38 = scalar_select %p37, 0, %s36
      %s39 = sadd.s32 1, %s30
      %s40 = scalar_select %p37, %s39, %s30
      %p41 = scmp.ge.s32.totalorder %s40, 1
      %s42 = scalar_select %p41, 0, %s40
      %p43 = scmp.lt.s32.totalorder %s31, 0
      %s44 = scalar_select %p43, %s31, 0
      %p45 = scmp.lt.s32.totalorder %s38, 0
      %s46 = scalar_select %p45, %s38, 0
      %s47 = ssub.s32 %s30, %s42
      %s48 = ssub.s32 %s44, %s46
      %s49 = sor.u32 %s47, %s48
      %p50 = scmp.eq.s32.totalorder %s49, 0
      %s52 = sadd.s32 %s51, 1
      %s53 = scalar_select %p50, %s51, %s52
      %p56 = pneg %p50
      %p57 = scmp.eq.s32.totalorder %s23, 1
      %p58 = por %p56, %p57
      %p59 = scmp.ne.s32.totalorder %s51, %s54
      %p60 = scmp.eq.s32.totalorder %s23, 0
      %p61 = por %p59, %p60
      %p62 = scmp.ne.s32.totalorder %s51, %s54
      %p63 = scmp.eq.s32.totalorder %s28, 1
      %p64 = por %p62, %p63
      %p65 = scmp.ne.s32.totalorder %s54, %s55
      %p66 = scmp.eq.s32.totalorder %s28, 0
      %p67 = por %p65, %p66
      %p68 = scmp.ne.s32.totalorder %s54, %s55
      %p69 = scmp.eq.s32.totalorder %s29, 1
      %p70 = por %p68, %p69
      %p72 = scmp.ne.s32.totalorder %s55, %s71
      %p73 = scmp.eq.s32.totalorder %s29, 0
      %p74 = por %p72, %p73
      %p75 = scmp.lt.s32.totalorder %s31, 0
      %s76 = scalar_select %p75, %s31, 0
      %p77 = scmp.lt.s32.totalorder %s38, 0
      %s78 = scalar_select %p77, %s38, 0
      %s79 = ssub.s32 %s76, %s78
      %p80 = scmp.eq.s32.totalorder %s79, 0
      %s82 = sadd.s32 %s81, 1
      %s83 = scalar_select %p80, %s81, %s82
      %p86 = pneg %p80
      %p87 = scmp.eq.s32.totalorder %s23, 1
      %p88 = por %p86, %p87
      %p89 = scmp.ne.s32.totalorder %s81, %s84
      %p90 = scmp.eq.s32.totalorder %s23, 0
      %p91 = por %p89, %p90
      %p92 = scmp.ne.s32.totalorder %s81, %s84
      %p93 = scmp.eq.s32.totalorder %s28, 1
      %p94 = por %p92, %p93
      %p95 = scmp.ne.s32.totalorder %s84, %s85
      %p96 = scmp.eq.s32.totalorder %s28, 0
      %p97 = por %p95, %p96
      %p98 = scmp.ne.s32.totalorder %s84, %s85
      %p99 = scmp.eq.s32.totalorder %s29, 1
      %p100 = por %p98, %p99
      %p102 = scmp.ne.s32.totalorder %s85, %s101
      %p103 = scmp.eq.s32.totalorder %s29, 0
      %p104 = por %p102, %p103
      %s106 = sadd.s32 %s105, 1
      %p109 = scmp.eq.s32.totalorder %s23, 1
      %p110 = scmp.ne.s32.totalorder %s105, %s107
      %p111 = scmp.eq.s32.totalorder %s23, 0
      %p112 = por %p110, %p111
      %p113 = scmp.ne.s32.totalorder %s105, %s107
      %p114 = scmp.eq.s32.totalorder %s28, 1
      %p115 = por %p113, %p114
      %p116 = scmp.ne.s32.totalorder %s107, %s108
      %p117 = scmp.eq.s32.totalorder %s28, 0
      %p118 = por %p116, %p117
      %p119 = scmp.ne.s32.totalorder %s107, %s108
      %p120 = scmp.eq.s32.totalorder %s29, 1
      %p121 = por %p119, %p120
      %p123 = scmp.ne.s32.totalorder %s108, %s122
      %p124 = scmp.eq.s32.totalorder %s29, 0
      %p125 = por %p123, %p124
      %s126 = ssub.s32 %s31, 1
      %p127 = scmp.gt.s32.totalorder %s126, 0
      %s128 = scalar_select %p127, %s126, 0
      %s129 = ssub.s32 %s38, 1
      %p130 = scmp.gt.s32.totalorder %s129, 0
      %s131 = scalar_select %p130, %s129, 0
      %s132 = ssub.s32 %s128, %s131
      %p133 = scmp.eq.s32.totalorder %s132, 0
      %s135 = sadd.s32 %s134, 1
      %s136 = scalar_select %p133, %s134, %s135
      %p139 = pneg %p133
      %p140 = scmp.eq.s32.totalorder %s23, 1
      %p141 = por %p139, %p140
      %p142 = scmp.ne.s32.totalorder %s134, %s137
      %p143 = scmp.eq.s32.totalorder %s23, 0
      %p144 = por %p142, %p143
      %p145 = scmp.ne.s32.totalorder %s134, %s137
      %p146 = scmp.eq.s32.totalorder %s28, 1
      %p147 = por %p145, %p146
      %p148 = scmp.ne.s32.totalorder %s137, %s138
      %p149 = scmp.eq.s32.totalorder %s28, 0
      %p150 = por %p148, %p149
      %p151 = scmp.ne.s32.totalorder %s137, %s138
      %p152 = scmp.eq.s32.totalorder %s29, 1
      %p153 = por %p151, %p152
      %p155 = scmp.ne.s32.totalorder %s138, %s154
      %p156 = scmp.eq.s32.totalorder %s29, 0
      %p157 = por %p155, %p156
      %s158 = ssub.s32 %s31, 1
      %p159 = scmp.gt.s32.totalorder %s158, 0
      %s160 = scalar_select %p159, %s158, 0
      %s161 = ssub.s32 %s38, 1
      %p162 = scmp.gt.s32.totalorder %s161, 0
      %s163 = scalar_select %p162, %s161, 0
      %s164 = ssub.s32 %s160, %s163
      %p165 = scmp.eq.s32.totalorder %s164, 0
      %s167 = sadd.s32 %s166, 1
      %s168 = scalar_select %p165, %s166, %s167
      %p171 = pneg %p165
      %p172 = scmp.eq.s32.totalorder %s23, 1
      %p173 = por %p171, %p172
      %p174 = scmp.ne.s32.totalorder %s166, %s169
      %p175 = scmp.eq.s32.totalorder %s23, 0
      %p176 = por %p174, %p175
      %p177 = scmp.ne.s32.totalorder %s166, %s169
      %p178 = scmp.eq.s32.totalorder %s28, 1
      %p179 = por %p177, %p178
      %p180 = scmp.ne.s32.totalorder %s169, %s170
      %p181 = scmp.eq.s32.totalorder %s28, 0
      %p182 = por %p180, %p181
      %p183 = scmp.ne.s32.totalorder %s169, %s170
      %p184 = scmp.eq.s32.totalorder %s29, 1
      %p185 = por %p183, %p184
      %p187 = scmp.ne.s32.totalorder %s170, %s186
      %p188 = scmp.eq.s32.totalorder %s29, 0
      %p189 = por %p187, %p188
      %s190 = ssub.s32 %s31, 1
      %p191 = scmp.gt.s32.totalorder %s190, 0
      %s192 = scalar_select %p191, %s190, 0
      %s193 = ssub.s32 %s38, 1
      %p194 = scmp.gt.s32.totalorder %s193, 0
      %s195 = scalar_select %p194, %s193, 0
      %s196 = ssub.s32 %s30, %s42
      %s197 = ssub.s32 %s192, %s195
      %s198 = sor.u32 %s196, %s197
      %p199 = scmp.eq.s32.totalorder %s198, 0
      %s201 = sadd.s32 %s200, 1
      %s202 = scalar_select %p199, %s200, %s201
      %p205 = pneg %p199
      %p206 = scmp.eq.s32.totalorder %s23, 1
      %p207 = por %p205, %p206
      %p208 = scmp.ne.s32.totalorder %s200, %s203
      %p209 = scmp.eq.s32.totalorder %s23, 0
      %p210 = por %p208, %p209
      %p211 = scmp.ne.s32.totalorder %s200, %s203
      %p212 = scmp.eq.s32.totalorder %s28, 1
      %p213 = por %p211, %p212
      %p214 = scmp.ne.s32.totalorder %s203, %s204
      %p215 = scmp.eq.s32.totalorder %s28, 0
      %p216 = por %p214, %p215
      %p217 = scmp.ne.s32.totalorder %s203, %s204
      %p218 = scmp.eq.s32.totalorder %s29, 1
      %p219 = por %p217, %p218
      %p221 = scmp.ne.s32.totalorder %s204, %s220
      %p222 = scmp.eq.s32.totalorder %s29, 0
      %p223 = por %p221, %p222
      %p224 = scmp.le.s32.totalorder 1, %s23
      %p225 = scmp.lt.s32.totalorder %s23, 3
      %p226 = pnand %p224, %p225
      %p227 = pneg %p226
      // Predicated region
      $region9: #{tpu_custom_call.1} parent=5 // pred_check
        _
      $region10: #{tpu_custom_call.1} parent=5 // pred_check_branch
        %229 = sbr.rel (%p226) target = $region12
      $region11: #{tpu_custom_call.1} parent=5 // pred_region
        %s230 = ssub.s32 %s23, 1
        // Predicated region
        $region13: #{tpu_custom_call.1} parent=11 // pred_check
          %p231 = pneg %p118
        $region14: #{tpu_custom_call.1} parent=11 // pred_check_branch
          %233 = sbr.rel (%p231) target = $region16
        $region15: #{tpu_custom_call.1} parent=11 // pred_region
          _
        $region16: #{tpu_custom_call.1} parent=11 // pred_fallthru
          _
      $region12: #{tpu_custom_call.1} parent=5 // pred_fallthru
        _
      %p234 = scmp.lt.s32.totalorder %s23, 2
      // Predicated region
      $region17: #{tpu_custom_call.1} parent=5 // pred_check
        %p235 = pneg %p234
      $region18: #{tpu_custom_call.1} parent=5 // pred_check_branch
        %237 = sbr.rel (%p235) target = $region20
      $region19: #{tpu_custom_call.1} parent=5 // pred_region
        // Predicated region
        $region21: #{tpu_custom_call.1} parent=19 // pred_check
          %p238 = pneg %p61
        $region22: #{tpu_custom_call.1} parent=19 // pred_check_branch
          %240 = sbr.rel (%p238) target = $region24
        $region23: #{tpu_custom_call.1} parent=19 // pred_region
          %s241 = sand.u32 %s51, 1
          %s242 = scalar_lea.sflag [#allocation5], %s241
          %s243 = sand.u32 %s51, 1
          %s244 = smul.addr %s243, 64
          %s245 = scalar_lea.vmem [#allocation4], %s244
          %p246 = scmp.lt.s32.totalorder %s31, 0
          %s247 = scalar_select %p246, %s31, 0
          %s248 = smul.u32 8, %s247
          %250 = vsyncadd %s242, 0
          %s251 = smul.addr %s30, 8
          %s252 = sadd.s32 %s248, %s251
          %s253 = smul.addr %s252, 8
          %s254 = scalar_lea.hbm %s0, %s253
          %s256 = sshll.u32 %s254, 4
          %s257 = int_to_ptr.hbm [resolvable:$true] %s256
          %s258 = sshll.u32 %s245, 4
          %s259 = int_to_ptr.vmem [resolvable:$true] %s258
          %261 = dma.hbm_to_vmem [thread:$0]  %s257, 1024, %s259, %s242
        $region24: #{tpu_custom_call.1} parent=19 // pred_fallthru
          _
        // Predicated region
        $region25: #{tpu_custom_call.1} parent=19 // pred_check
          %p262 = pneg %p91
        $region26: #{tpu_custom_call.1} parent=19 // pred_check_branch
          %264 = sbr.rel (%p262) target = $region28
        $region27: #{tpu_custom_call.1} parent=19 // pred_region
          %s265 = sand.u32 %s23, 1
          %s266 = scalar_lea.sflag [#allocation8], %s265
          %s267 = sand.u32 %s81, 1
          %s268 = smul.addr %s267, 1024
          %s269 = scalar_lea.vmem [#allocation7], %s268
          %p270 = scmp.lt.s32.totalorder %s31, 0
          %s271 = scalar_select %p270, %s31, 0
          %s272 = smul.u32 128, %s271
          %274 = vsyncadd %s266, 0
          %s275 = smul.addr %s272, 8
          %s276 = scalar_lea.hbm %s1, %s275
          %s277 = sshll.u32 %s276, 4
          %s278 = int_to_ptr.hbm [resolvable:$true] %s277
          %s279 = sshll.u32 %s269, 4
          %s280 = int_to_ptr.vmem [resolvable:$true] %s279
          %285 = dma.hbm_to_vmem [thread:$0]  %s278, 16384, %s280, %s266, 128, 128, 8
        $region28: #{tpu_custom_call.1} parent=19 // pred_fallthru
          _
        // Predicated region
        $region29: #{tpu_custom_call.1} parent=19 // pred_check
          %p286 = pneg %p144
        $region30: #{tpu_custom_call.1} parent=19 // pred_check_branch
          %288 = sbr.rel (%p286) target = $region32
        $region31: #{tpu_custom_call.1} parent=19 // pred_region
          %s289 = sand.u32 %s23, 1
          %s290 = scalar_lea.sflag [#allocation8], %s289
          %s291 = sand.u32 %s134, 1
          %s292 = smul.addr %s291, 1024
          %s293 = scalar_lea.vmem [#allocation9], %s292
          %s294 = ssub.s32 %s31, 1
          %p295 = scmp.gt.s32.totalorder %s294, 0
          %s296 = scalar_select %p295, %s294, 0
          %s297 = smul.u32 8, %s296
          %299 = vsyncadd %s290, 0
          %s300 = smul.addr %s297, 8
          %s301 = scalar_lea.hbm %s3, %s300
          %s302 = sshll.u32 %s301, 4
          %s303 = int_to_ptr.hbm [resolvable:$true] %s302
          %s304 = sshll.u32 %s293, 4
          %s305 = int_to_ptr.vmem [resolvable:$true] %s304
          %310 = dma.hbm_to_vmem [thread:$0]  %s303, 16384, %s305, %s290, 1024, 1024, 64
        $region32: #{tpu_custom_call.1} parent=19 // pred_fallthru
          _
        // Predicated region
        $region33: #{tpu_custom_call.1} parent=19 // pred_check
          %p311 = pneg %p176
        $region34: #{tpu_custom_call.1} parent=19 // pred_check_branch
          %313 = sbr.rel (%p311) target = $region36
        $region35: #{tpu_custom_call.1} parent=19 // pred_region
          %s314 = sand.u32 %s166, 1
          %s315 = scalar_lea.sflag [#allocation11], %s314
          %s316 = sand.u32 %s166, 1
          %s317 = smul.addr %s316, 8
          %s318 = scalar_lea.vmem [#allocation10], %s317
          %s319 = ssub.s32 %s31, 1
          %p320 = scmp.gt.s32.totalorder %s319, 0
          %s321 = scalar_select %p320, %s319, 0
          %s322 = smul.u32 8, %s321
          %324 = vsyncadd %s315, 0
          %s325 = scalar_lea.hbm %s4, %s322
          %s327 = sshll.u32 %s325, 4
          %s328 = int_to_ptr.hbm [resolvable:$true] %s327
          %s329 = sshll.u32 %s318, 4
          %s330 = int_to_ptr.vmem [resolvable:$true] %s329
          %332 = dma.hbm_to_vmem [thread:$0]  %s328, 128, %s330, %s315
        $region36: #{tpu_custom_call.1} parent=19 // pred_fallthru
          _
      $region20: #{tpu_custom_call.1} parent=5 // pred_fallthru
        _
      %p333 = scmp.le.s32.totalorder 1, %s23
      %p334 = scmp.lt.s32.totalorder %s23, 3
      %p335 = pnand %p333, %p334
      %p336 = pneg %p335
      // Predicated region
      $region37: #{tpu_custom_call.1} parent=5 // pred_check
        _
      $region38: #{tpu_custom_call.1} parent=5 // pred_check_branch
        %338 = sbr.rel (%p335) target = $region40
      $region39: #{tpu_custom_call.1} parent=5 // pred_region
        %s339 = ssub.s32 %s23, 1
        %s340 = sand.u32 %s54, 1
        %s341 = scalar_lea.sflag [#allocation5], %s340
        %s342 = sand.u32 %s54, 1
        %s343 = smul.addr %s342, 64
        %s344 = scalar_lea.vmem [#allocation4], %s343
        // Predicated region
        $region41: #{tpu_custom_call.1} parent=39 // pred_check
          %p345 = pneg %p67
        $region42: #{tpu_custom_call.1} parent=39 // pred_check_branch
          %347 = sbr.rel (%p345) target = $region44
        $region43: #{tpu_custom_call.1} parent=39 // pred_region
          %349 = dma.done %s341, 1024
        $region44: #{tpu_custom_call.1} parent=39 // pred_fallthru
          _
        %s350 = sand.u32 %s28, 1
        %s351 = scalar_lea.sflag [#allocation8], %s350
        %s352 = sand.u32 %s84, 1
        %s353 = smul.addr %s352, 1024
        %s354 = scalar_lea.vmem [#allocation7], %s353
        // Predicated region
        $region45: #{tpu_custom_call.1} parent=39 // pred_check
          %p355 = pneg %p97
        $region46: #{tpu_custom_call.1} parent=39 // pred_check_branch
          %357 = sbr.rel (%p355) target = $region48
        $region47: #{tpu_custom_call.1} parent=39 // pred_region
          %359 = dma.done %s351, 16384
        $region48: #{tpu_custom_call.1} parent=39 // pred_fallthru
          _
        %s360 = sand.u32 %s28, 1
        %s361 = scalar_lea.sflag [#allocation8], %s360
        %s362 = sand.u32 %s137, 1
        %s363 = smul.addr %s362, 1024
        %s364 = scalar_lea.vmem [#allocation9], %s363
        // Predicated region
        $region49: #{tpu_custom_call.1} parent=39 // pred_check
          %p365 = pneg %p150
        $region50: #{tpu_custom_call.1} parent=39 // pred_check_branch
          %367 = sbr.rel (%p365) target = $region52
        $region51: #{tpu_custom_call.1} parent=39 // pred_region
          %369 = dma.done %s361, 16384
        $region52: #{tpu_custom_call.1} parent=39 // pred_fallthru
          _
        %s370 = sand.u32 %s169, 1
        %s371 = scalar_lea.sflag [#allocation11], %s370
        %s372 = sand.u32 %s169, 1
        %s373 = smul.addr %s372, 8
        %s374 = scalar_lea.vmem [#allocation10], %s373
        // Predicated region
        $region53: #{tpu_custom_call.1} parent=39 // pred_check
          %p375 = pneg %p182
        $region54: #{tpu_custom_call.1} parent=39 // pred_check_branch
          %377 = sbr.rel (%p375) target = $region56
        $region55: #{tpu_custom_call.1} parent=39 // pred_region
          %379 = dma.done %s371, 128
        $region56: #{tpu_custom_call.1} parent=39 // pred_fallthru
          _
        %s380 = sand.u32 %s54, 1
        %s381 = scalar_lea.sflag [#allocation5], %s380
        %s382 = sand.u32 %s54, 1
        %s383 = smul.addr %s382, 64
        %s384 = scalar_lea.vmem [#allocation4], %s383
        %p385 = pneg %p67
        %p386 = pneg %p64
        %s387 = sand.u32 %s28, 1
        %s388 = scalar_lea.sflag [#allocation8], %s387
        %s389 = sand.u32 %s84, 1
        %s390 = smul.addr %s389, 1024
        %s391 = scalar_lea.vmem [#allocation7], %s390
        %p392 = pneg %p97
        %p393 = pneg %p94
        %p394 = pneg %p118
        %p395 = pneg %p115
        %s396 = sand.u32 %s28, 1
        %s397 = scalar_lea.sflag [#allocation8], %s396
        %s398 = sand.u32 %s137, 1
        %s399 = smul.addr %s398, 1024
        %s400 = scalar_lea.vmem [#allocation9], %s399
        %p401 = pneg %p150
        %p402 = pneg %p147
        %s403 = sand.u32 %s169, 1
        %s404 = scalar_lea.sflag [#allocation11], %s403
        %s405 = sand.u32 %s169, 1
        %s406 = smul.addr %s405, 8
        %s407 = scalar_lea.vmem [#allocation10], %s406
        %p408 = pneg %p182
        %p409 = pneg %p179
        %p410 = pneg %p216
        %p411 = pneg %p213
        %s412 = sand.u32 %s203, 1
        %s413 = scalar_lea.sflag [#allocation6], %s412
        %s414 = sand.u32 %s203, 1
        %s415 = smul.addr %s414, 64
        %s416 = scalar_lea.vmem [#allocation12], %s415
        %p417 = scmp.lt.s32.totalorder %s33, 0
        %s418 = scalar_select %p417, %s33, 0
        %s419 = smul.u32 8, %s418
        %p420 = scmp.lt.s32.totalorder %s33, 0
        %s421 = scalar_select %p420, %s33, 0
        %s422 = smul.u32 128, %s421
        %s423 = ssub.s32 %s33, 1
        %p424 = scmp.gt.s32.totalorder %s423, 0
        %s425 = scalar_select %p424, %s423, 0
        %s426 = smul.u32 8, %s425
        %s427 = ssub.s32 %s33, 1
        %p428 = scmp.gt.s32.totalorder %s427, 0
        %s429 = scalar_select %p428, %s427, 0
        %s430 = smul.u32 8, %s429
        %s431 = ssub.s32 %s33, 1
        %p432 = scmp.gt.s32.totalorder %s431, 0
        %s433 = scalar_select %p432, %s431, 0
        %s434 = smul.u32 8, %s433
        %p435 = scmp.lt.s32.totalorder %s33, 1
        // Predicated region
        $region57: #{tpu_custom_call.1} parent=39 // pred_check
          %p436 = pneg %p435
        $region58: #{tpu_custom_call.1} parent=39 // pred_check_branch
          %438 = sbr.rel (%p436) target = $region60
        $region59: #{tpu_custom_call.1} parent=39 // pred_region
          %p439 = scmp.eq.s32.totalorder %s33, 0
          // Predicated region
          $region61: #{tpu_custom_call.1} parent=59 // pred_check
            %p440 = pneg %p439
          $region62: #{tpu_custom_call.1} parent=59 // pred_check_branch
            %442 = sbr.rel (%p440) target = $region64
          $region63: #{tpu_custom_call.1} parent=59 // pred_region
            %443 = vst [vmem:[#allocation2] sm:$0xff] 0.0
          $region64: #{tpu_custom_call.1} parent=59 // pred_fallthru
            _
          %v444 = vld [vmem:[#allocation2] sm:$0xff]
          %v445 = vld [vmem:[%s344] sm:$0xff]
          %v446 = vld [vmem:[%s344 + $0x8] sm:$0xff]
          %v447 = vld [vmem:[%s344 + $0x10] sm:$0xff]
          %v448 = vld [vmem:[%s344 + $0x18] sm:$0xff]
          %v449 = vld [vmem:[%s344 + $0x20] sm:$0xff]
          %v450 = vld [vmem:[%s344 + $0x28] sm:$0xff]
          %v451 = vld [vmem:[%s344 + $0x30] sm:$0xff]
          %v452 = vld [vmem:[%s344 + $0x38] sm:$0xff]
          %v453 = vld [vmem:[%s354] sm:$0xff]
          %v454 = vld [vmem:[%s354 + $0x8] sm:$0xff]
          %v455 = vld [vmem:[%s354 + $0x10] sm:$0xff]
          %v456 = vld [vmem:[%s354 + $0x18] sm:$0xff]
          %v457 = vld [vmem:[%s354 + $0x20] sm:$0xff]
          %v458 = vld [vmem:[%s354 + $0x28] sm:$0xff]
          %v459 = vld [vmem:[%s354 + $0x30] sm:$0xff]
          %v460 = vld [vmem:[%s354 + $0x38] sm:$0xff]
          %v461 = vld [vmem:[%s354 + $0x40] sm:$0xff]
          %v462 = vld [vmem:[%s354 + $0x48] sm:$0xff]
          %v463 = vld [vmem:[%s354 + $0x50] sm:$0xff]
          %v464 = vld [vmem:[%s354 + $0x58] sm:$0xff]
          %v465 = vld [vmem:[%s354 + $0x60] sm:$0xff]
          %v466 = vld [vmem:[%s354 + $0x68] sm:$0xff]
          %v467 = vld [vmem:[%s354 + $0x70] sm:$0xff]
          %v468 = vld [vmem:[%s354 + $0x78] sm:$0xff]
          %v469 = vld [vmem:[%s354 + $0x80] sm:$0xff]
          %v470 = vld [vmem:[%s354 + $0x88] sm:$0xff]
          %v471 = vld [vmem:[%s354 + $0x90] sm:$0xff]
          %v472 = vld [vmem:[%s354 + $0x98] sm:$0xff]
          %v473 = vld [vmem:[%s354 + $0xa0] sm:$0xff]
          %v474 = vld [vmem:[%s354 + $0xa8] sm:$0xff]
          %v475 = vld [vmem:[%s354 + $0xb0] sm:$0xff]
          %v476 = vld [vmem:[%s354 + $0xb8] sm:$0xff]
          %v477 = vld [vmem:[%s354 + $0xc0] sm:$0xff]
          %v478 = vld [vmem:[%s354 + $0xc8] sm:$0xff]
          %v479 = vld [vmem:[%s354 + $0xd0] sm:$0xff]
          %v480 = vld [vmem:[%s354 + $0xd8] sm:$0xff]
          %v481 = vld [vmem:[%s354 + $0xe0] sm:$0xff]
          %v482 = vld [vmem:[%s354 + $0xe8] sm:$0xff]
          %v483 = vld [vmem:[%s354 + $0xf0] sm:$0xff]
          %v484 = vld [vmem:[%s354 + $0xf8] sm:$0xff]
          %v485 = vld [vmem:[%s354 + $0x100] sm:$0xff]
          %v486 = vld [vmem:[%s354 + $0x108] sm:$0xff]
          %v487 = vld [vmem:[%s354 + $0x110] sm:$0xff]
          %v488 = vld [vmem:[%s354 + $0x118] sm:$0xff]
          %v489 = vld [vmem:[%s354 + $0x120] sm:$0xff]
          %v490 = vld [vmem:[%s354 + $0x128] sm:$0xff]
          %v491 = vld [vmem:[%s354 + $0x130] sm:$0xff]
          %v492 = vld [vmem:[%s354 + $0x138] sm:$0xff]
          %v493 = vld [vmem:[%s354 + $0x140] sm:$0xff]
          %v494 = vld [vmem:[%s354 + $0x148] sm:$0xff]
          %v495 = vld [vmem:[%s354 + $0x150] sm:$0xff]
          %v496 = vld [vmem:[%s354 + $0x158] sm:$0xff]
          %v497 = vld [vmem:[%s354 + $0x160] sm:$0xff]
          %v498 = vld [vmem:[%s354 + $0x168] sm:$0xff]
          %v499 = vld [vmem:[%s354 + $0x170] sm:$0xff]
          %v500 = vld [vmem:[%s354 + $0x178] sm:$0xff]
          %v501 = vld [vmem:[%s354 + $0x180] sm:$0xff]
          %v502 = vld [vmem:[%s354 + $0x188] sm:$0xff]
          %v503 = vld [vmem:[%s354 + $0x190] sm:$0xff]
          %v504 = vld [vmem:[%s354 + $0x198] sm:$0xff]
          %v505 = vld [vmem:[%s354 + $0x1a0] sm:$0xff]
          %v506 = vld [vmem:[%s354 + $0x1a8] sm:$0xff]
          %v507 = vld [vmem:[%s354 + $0x1b0] sm:$0xff]
          %v508 = vld [vmem:[%s354 + $0x1b8] sm:$0xff]
          %v509 = vld [vmem:[%s354 + $0x1c0] sm:$0xff]
          %v510 = vld [vmem:[%s354 + $0x1c8] sm:$0xff]
          %v511 = vld [vmem:[%s354 + $0x1d0] sm:$0xff]
          %v512 = vld [vmem:[%s354 + $0x1d8] sm:$0xff]
          %v513 = vld [vmem:[%s354 + $0x1e0] sm:$0xff]
          %v514 = vld [vmem:[%s354 + $0x1e8] sm:$0xff]
          %v515 = vld [vmem:[%s354 + $0x1f0] sm:$0xff]
          %v516 = vld [vmem:[%s354 + $0x1f8] sm:$0xff]
          %v517 = vld [vmem:[%s354 + $0x200] sm:$0xff]
          %v518 = vld [vmem:[%s354 + $0x208] sm:$0xff]
          %v519 = vld [vmem:[%s354 + $0x210] sm:$0xff]
          %v520 = vld [vmem:[%s354 + $0x218] sm:$0xff]
          %v521 = vld [vmem:[%s354 + $0x220] sm:$0xff]
          %v522 = vld [vmem:[%s354 + $0x228] sm:$0xff]
          %v523 = vld [vmem:[%s354 + $0x230] sm:$0xff]
          %v524 = vld [vmem:[%s354 + $0x238] sm:$0xff]
          %v525 = vld [vmem:[%s354 + $0x240] sm:$0xff]
          %v526 = vld [vmem:[%s354 + $0x248] sm:$0xff]
          %v527 = vld [vmem:[%s354 + $0x250] sm:$0xff]
          %v528 = vld [vmem:[%s354 + $0x258] sm:$0xff]
          %v529 = vld [vmem:[%s354 + $0x260] sm:$0xff]
          %v530 = vld [vmem:[%s354 + $0x268] sm:$0xff]
          %v531 = vld [vmem:[%s354 + $0x270] sm:$0xff]
          %v532 = vld [vmem:[%s354 + $0x278] sm:$0xff]
          %v533 = vld [vmem:[%s354 + $0x280] sm:$0xff]
          %v534 = vld [vmem:[%s354 + $0x288] sm:$0xff]
          %v535 = vld [vmem:[%s354 + $0x290] sm:$0xff]
          %v536 = vld [vmem:[%s354 + $0x298] sm:$0xff]
          %v537 = vld [vmem:[%s354 + $0x2a0] sm:$0xff]
          %v538 = vld [vmem:[%s354 + $0x2a8] sm:$0xff]
          %v539 = vld [vmem:[%s354 + $0x2b0] sm:$0xff]
          %v540 = vld [vmem:[%s354 + $0x2b8] sm:$0xff]
          %v541 = vld [vmem:[%s354 + $0x2c0] sm:$0xff]
          %v542 = vld [vmem:[%s354 + $0x2c8] sm:$0xff]
          %v543 = vld [vmem:[%s354 + $0x2d0] sm:$0xff]
          %v544 = vld [vmem:[%s354 + $0x2d8] sm:$0xff]
          %v545 = vld [vmem:[%s354 + $0x2e0] sm:$0xff]
          %v546 = vld [vmem:[%s354 + $0x2e8] sm:$0xff]
          %v547 = vld [vmem:[%s354 + $0x2f0] sm:$0xff]
          %v548 = vld [vmem:[%s354 + $0x2f8] sm:$0xff]
          %v549 = vld [vmem:[%s354 + $0x300] sm:$0xff]
          %v550 = vld [vmem:[%s354 + $0x308] sm:$0xff]
          %v551 = vld [vmem:[%s354 + $0x310] sm:$0xff]
          %v552 = vld [vmem:[%s354 + $0x318] sm:$0xff]
          %v553 = vld [vmem:[%s354 + $0x320] sm:$0xff]
          %v554 = vld [vmem:[%s354 + $0x328] sm:$0xff]
          %v555 = vld [vmem:[%s354 + $0x330] sm:$0xff]
          %v556 = vld [vmem:[%s354 + $0x338] sm:$0xff]
          %v557 = vld [vmem:[%s354 + $0x340] sm:$0xff]
          %v558 = vld [vmem:[%s354 + $0x348] sm:$0xff]
          %v559 = vld [vmem:[%s354 + $0x350] sm:$0xff]
          %v560 = vld [vmem:[%s354 + $0x358] sm:$0xff]
          %v561 = vld [vmem:[%s354 + $0x360] sm:$0xff]
          %v562 = vld [vmem:[%s354 + $0x368] sm:$0xff]
          %v563 = vld [vmem:[%s354 + $0x370] sm:$0xff]
          %v564 = vld [vmem:[%s354 + $0x378] sm:$0xff]
          %v565 = vld [vmem:[%s354 + $0x380] sm:$0xff]
          %v566 = vld [vmem:[%s354 + $0x388] sm:$0xff]
          %v567 = vld [vmem:[%s354 + $0x390] sm:$0xff]
          %v568 = vld [vmem:[%s354 + $0x398] sm:$0xff]
          %v569 = vld [vmem:[%s354 + $0x3a0] sm:$0xff]
          %v570 = vld [vmem:[%s354 + $0x3a8] sm:$0xff]
          %v571 = vld [vmem:[%s354 + $0x3b0] sm:$0xff]
          %v572 = vld [vmem:[%s354 + $0x3b8] sm:$0xff]
          %v573 = vld [vmem:[%s354 + $0x3c0] sm:$0xff]
          %v574 = vld [vmem:[%s354 + $0x3c8] sm:$0xff]
          %v575 = vld [vmem:[%s354 + $0x3d0] sm:$0xff]
          %v576 = vld [vmem:[%s354 + $0x3d8] sm:$0xff]
          %v577 = vld [vmem:[%s354 + $0x3e0] sm:$0xff]
          %v578 = vld [vmem:[%s354 + $0x3e8] sm:$0xff]
          %v579 = vld [vmem:[%s354 + $0x3f0] sm:$0xff]
          %v580 = vld [vmem:[%s354 + $0x3f8] sm:$0xff]
          %581 = vmatpush.msra.mxu0 %v468
          %582 = vmatpush.msra.mxu0 %v467
          %583 = vmatpush.msra.mxu0 %v466
          %584 = vmatpush.msra.mxu0 %v465
          %585 = vmatpush.msra.mxu0 %v464
          %586 = vmatpush.msra.mxu0 %v463
          %587 = vmatpush.msra.mxu0 %v462
          %588 = vmatpush.msra.mxu0 %v461
          %589 = vmatpush.msra.mxu0 %v460
          %590 = vmatpush.msra.mxu0 %v459
          %591 = vmatpush.msra.mxu0 %v458
          %592 = vmatpush.msra.mxu0 %v457
          %593 = vmatpush.msra.mxu0 %v456
          %594 = vmatpush.msra.mxu0 %v455
          %595 = vmatpush.msra.mxu0 %v454
          %596 = vmatpush.msra.mxu0 %v453
          %597 = vmatmul.f32.gmra.mxu0 %v445
          %v598 = vpop.f32.mrf.mxu0
          %v599 = vadd.f32 0.0, %v598
          %600 = vdwg.mxu0
          %601 = vmatpush.msra.mxu0 %v484
          %602 = vmatpush.msra.mxu0 %v483
          %603 = vmatpush.msra.mxu0 %v482
          %604 = vmatpush.msra.mxu0 %v481
          %605 = vmatpush.msra.mxu0 %v480
          %606 = vmatpush.msra.mxu0 %v479
          %607 = vmatpush.msra.mxu0 %v478
          %608 = vmatpush.msra.mxu0 %v477
          %609 = vmatpush.msra.mxu0 %v476
          %610 = vmatpush.msra.mxu0 %v475
          %611 = vmatpush.msra.mxu0 %v474
          %612 = vmatpush.msra.mxu0 %v473
          %613 = vmatpush.msra.mxu0 %v472
          %614 = vmatpush.msra.mxu0 %v471
          %615 = vmatpush.msra.mxu0 %v470
          %616 = vmatpush.msra.mxu0 %v469
          %617 = vmatmul.f32.gmra.mxu0 %v446
          %v618 = vpop.f32.mrf.mxu0
          %v619 = vadd.f32 %v599, %v618
          %620 = vdwg.mxu0
          %621 = vmatpush.msra.mxu0 %v500
          %622 = vmatpush.msra.mxu0 %v499
          %623 = vmatpush.msra.mxu0 %v498
          %624 = vmatpush.msra.mxu0 %v497
          %625 = vmatpush.msra.mxu0 %v496
          %626 = vmatpush.msra.mxu0 %v495
          %627 = vmatpush.msra.mxu0 %v494
          %628 = vmatpush.msra.mxu0 %v493
          %629 = vmatpush.msra.mxu0 %v492
          %630 = vmatpush.msra.mxu0 %v491
          %631 = vmatpush.msra.mxu0 %v490
          %632 = vmatpush.msra.mxu0 %v489
          %633 = vmatpush.msra.mxu0 %v488
          %634 = vmatpush.msra.mxu0 %v487
          %635 = vmatpush.msra.mxu0 %v486
          %636 = vmatpush.msra.mxu0 %v485
          %637 = vmatmul.f32.gmra.mxu0 %v447
          %v638 = vpop.f32.mrf.mxu0
          %v639 = vadd.f32 %v619, %v638
          %640 = vdwg.mxu0
          %641 = vmatpush.msra.mxu0 %v516
          %642 = vmatpush.msra.mxu0 %v515
          %643 = vmatpush.msra.mxu0 %v514
          %644 = vmatpush.msra.mxu0 %v513
          %645 = vmatpush.msra.mxu0 %v512
          %646 = vmatpush.msra.mxu0 %v511
          %647 = vmatpush.msra.mxu0 %v510
          %648 = vmatpush.msra.mxu0 %v509
          %649 = vmatpush.msra.mxu0 %v508
          %650 = vmatpush.msra.mxu0 %v507
          %651 = vmatpush.msra.mxu0 %v506
          %652 = vmatpush.msra.mxu0 %v505
          %653 = vmatpush.msra.mxu0 %v504
          %654 = vmatpush.msra.mxu0 %v503
          %655 = vmatpush.msra.mxu0 %v502
          %656 = vmatpush.msra.mxu0 %v501
          %657 = vmatmul.f32.gmra.mxu0 %v448
          %v658 = vpop.f32.mrf.mxu0
          %v659 = vadd.f32 %v639, %v658
          %660 = vdwg.mxu0
          %661 = vmatpush.msra.mxu0 %v532
          %662 = vmatpush.msra.mxu0 %v531
          %663 = vmatpush.msra.mxu0 %v530
          %664 = vmatpush.msra.mxu0 %v529
          %665 = vmatpush.msra.mxu0 %v528
          %666 = vmatpush.msra.mxu0 %v527
          %667 = vmatpush.msra.mxu0 %v526
          %668 = vmatpush.msra.mxu0 %v525
          %669 = vmatpush.msra.mxu0 %v524
          %670 = vmatpush.msra.mxu0 %v523
          %671 = vmatpush.msra.mxu0 %v522
          %672 = vmatpush.msra.mxu0 %v521
          %673 = vmatpush.msra.mxu0 %v520
          %674 = vmatpush.msra.mxu0 %v519
          %675 = vmatpush.msra.mxu0 %v518
          %676 = vmatpush.msra.mxu0 %v517
          %677 = vmatmul.f32.gmra.mxu0 %v449
          %v678 = vpop.f32.mrf.mxu0
          %v679 = vadd.f32 %v659, %v678
          %680 = vdwg.mxu0
          %681 = vmatpush.msra.mxu0 %v548
          %682 = vmatpush.msra.mxu0 %v547
          %683 = vmatpush.msra.mxu0 %v546
          %684 = vmatpush.msra.mxu0 %v545
          %685 = vmatpush.msra.mxu0 %v544
          %686 = vmatpush.msra.mxu0 %v543
          %687 = vmatpush.msra.mxu0 %v542
          %688 = vmatpush.msra.mxu0 %v541
          %689 = vmatpush.msra.mxu0 %v540
          %690 = vmatpush.msra.mxu0 %v539
          %691 = vmatpush.msra.mxu0 %v538
          %692 = vmatpush.msra.mxu0 %v537
          %693 = vmatpush.msra.mxu0 %v536
          %694 = vmatpush.msra.mxu0 %v535
          %695 = vmatpush.msra.mxu0 %v534
          %696 = vmatpush.msra.mxu0 %v533
          %697 = vmatmul.f32.gmra.mxu0 %v450
          %v698 = vpop.f32.mrf.mxu0
          %v699 = vadd.f32 %v679, %v698
          %700 = vdwg.mxu0
          %701 = vmatpush.msra.mxu0 %v564
          %702 = vmatpush.msra.mxu0 %v563
          %703 = vmatpush.msra.mxu0 %v562
          %704 = vmatpush.msra.mxu0 %v561
          %705 = vmatpush.msra.mxu0 %v560
          %706 = vmatpush.msra.mxu0 %v559
          %707 = vmatpush.msra.mxu0 %v558
          %708 = vmatpush.msra.mxu0 %v557
          %709 = vmatpush.msra.mxu0 %v556
          %710 = vmatpush.msra.mxu0 %v555
          %711 = vmatpush.msra.mxu0 %v554
          %712 = vmatpush.msra.mxu0 %v553
          %713 = vmatpush.msra.mxu0 %v552
          %714 = vmatpush.msra.mxu0 %v551
          %715 = vmatpush.msra.mxu0 %v550
          %716 = vmatpush.msra.mxu0 %v549
          %717 = vmatmul.f32.gmra.mxu0 %v451
          %v718 = vpop.f32.mrf.mxu0
          %v719 = vadd.f32 %v699, %v718
          %720 = vdwg.mxu0
          %721 = vmatpush.msra.mxu0 %v580
          %722 = vmatpush.msra.mxu0 %v579
          %723 = vmatpush.msra.mxu0 %v578
          %724 = vmatpush.msra.mxu0 %v577
          %725 = vmatpush.msra.mxu0 %v576
          %726 = vmatpush.msra.mxu0 %v575
          %727 = vmatpush.msra.mxu0 %v574
          %728 = vmatpush.msra.mxu0 %v573
          %729 = vmatpush.msra.mxu0 %v572
          %730 = vmatpush.msra.mxu0 %v571
          %731 = vmatpush.msra.mxu0 %v570
          %732 = vmatpush.msra.mxu0 %v569
          %733 = vmatpush.msra.mxu0 %v568
          %734 = vmatpush.msra.mxu0 %v567
          %735 = vmatpush.msra.mxu0 %v566
          %736 = vmatpush.msra.mxu0 %v565
          %737 = vmatmul.f32.gmra.mxu0 %v452
          %v738 = vpop.f32.mrf.mxu0
          %v739 = vadd.f32 %v719, %v738
          %740 = vdwg.mxu0
          %v741 = vadd.f32 %v444, %v739
          %742 = vst [vmem:[#allocation2] sm:$0xff] %v741
          // Predicated region
          $region65: #{tpu_custom_call.1} parent=59 // pred_check
            %p743 = pneg %p439
          $region66: #{tpu_custom_call.1} parent=59 // pred_check_branch
            %745 = sbr.rel (%p743) target = $region68
          $region67: #{tpu_custom_call.1} parent=59 // pred_region
            %v746 = vld [vmem:[#allocation2] sm:$0xff]
            %v747 = vld [vmem:[%s2] sm:$0x1]
            %v749 = vperm.slane %v747, 0
            %v751 = vadd.f32 %v746, %v749
            %v752 = vmax.f32 %v751, 0.0
            %753 = vst [vmem:[#allocation3] sm:$0xff] %v752
          $region68: #{tpu_custom_call.1} parent=59 // pred_fallthru
            _
        $region60: #{tpu_custom_call.1} parent=39 // pred_fallthru
          _
        %p754 = scmp.ge.s32.totalorder %s33, 1
        // Predicated region
        $region69: #{tpu_custom_call.1} parent=39 // pred_check
          %p755 = pneg %p754
        $region70: #{tpu_custom_call.1} parent=39 // pred_check_branch
          %757 = sbr.rel (%p755) target = $region72
        $region71: #{tpu_custom_call.1} parent=39 // pred_region
          %v758 = vld [vmem:[#allocation3] sm:$0xff]
          %v759 = vld [vmem:[%s364] sm:$0xff]
          %v760 = vld [vmem:[%s364 + $0x8] sm:$0xff]
          %v761 = vld [vmem:[%s364 + $0x10] sm:$0xff]
          %v762 = vld [vmem:[%s364 + $0x18] sm:$0xff]
          %v763 = vld [vmem:[%s364 + $0x20] sm:$0xff]
          %v764 = vld [vmem:[%s364 + $0x28] sm:$0xff]
          %v765 = vld [vmem:[%s364 + $0x30] sm:$0xff]
          %v766 = vld [vmem:[%s364 + $0x38] sm:$0xff]
          %v767 = vld [vmem:[%s364 + $0x40] sm:$0xff]
          %v768 = vld [vmem:[%s364 + $0x48] sm:$0xff]
          %v769 = vld [vmem:[%s364 + $0x50] sm:$0xff]
          %v770 = vld [vmem:[%s364 + $0x58] sm:$0xff]
          %v771 = vld [vmem:[%s364 + $0x60] sm:$0xff]
          %v772 = vld [vmem:[%s364 + $0x68] sm:$0xff]
          %v773 = vld [vmem:[%s364 + $0x70] sm:$0xff]
          %v774 = vld [vmem:[%s364 + $0x78] sm:$0xff]
          %v775 = vld [vmem:[%s364 + $0x80] sm:$0xff]
          %v776 = vld [vmem:[%s364 + $0x88] sm:$0xff]
          %v777 = vld [vmem:[%s364 + $0x90] sm:$0xff]
          %v778 = vld [vmem:[%s364 + $0x98] sm:$0xff]
          %v779 = vld [vmem:[%s364 + $0xa0] sm:$0xff]
          %v780 = vld [vmem:[%s364 + $0xa8] sm:$0xff]
          %v781 = vld [vmem:[%s364 + $0xb0] sm:$0xff]
          %v782 = vld [vmem:[%s364 + $0xb8] sm:$0xff]
          %v783 = vld [vmem:[%s364 + $0xc0] sm:$0xff]
          %v784 = vld [vmem:[%s364 + $0xc8] sm:$0xff]
          %v785 = vld [vmem:[%s364 + $0xd0] sm:$0xff]
          %v786 = vld [vmem:[%s364 + $0xd8] sm:$0xff]
          %v787 = vld [vmem:[%s364 + $0xe0] sm:$0xff]
          %v788 = vld [vmem:[%s364 + $0xe8] sm:$0xff]
          %v789 = vld [vmem:[%s364 + $0xf0] sm:$0xff]
          %v790 = vld [vmem:[%s364 + $0xf8] sm:$0xff]
          %v791 = vld [vmem:[%s364 + $0x100] sm:$0xff]
          %v792 = vld [vmem:[%s364 + $0x108] sm:$0xff]
          %v793 = vld [vmem:[%s364 + $0x110] sm:$0xff]
          %v794 = vld [vmem:[%s364 + $0x118] sm:$0xff]
          %v795 = vld [vmem:[%s364 + $0x120] sm:$0xff]
          %v796 = vld [vmem:[%s364 + $0x128] sm:$0xff]
          %v797 = vld [vmem:[%s364 + $0x130] sm:$0xff]
          %v798 = vld [vmem:[%s364 + $0x138] sm:$0xff]
          %v799 = vld [vmem:[%s364 + $0x140] sm:$0xff]
          %v800 = vld [vmem:[%s364 + $0x148] sm:$0xff]
          %v801 = vld [vmem:[%s364 + $0x150] sm:$0xff]
          %v802 = vld [vmem:[%s364 + $0x158] sm:$0xff]
          %v803 = vld [vmem:[%s364 + $0x160] sm:$0xff]
          %v804 = vld [vmem:[%s364 + $0x168] sm:$0xff]
          %v805 = vld [vmem:[%s364 + $0x170] sm:$0xff]
          %v806 = vld [vmem:[%s364 + $0x178] sm:$0xff]
          %v807 = vld [vmem:[%s364 + $0x180] sm:$0xff]
          %v808 = vld [vmem:[%s364 + $0x188] sm:$0xff]
          %v809 = vld [vmem:[%s364 + $0x190] sm:$0xff]
          %v810 = vld [vmem:[%s364 + $0x198] sm:$0xff]
          %v811 = vld [vmem:[%s364 + $0x1a0] sm:$0xff]
          %v812 = vld [vmem:[%s364 + $0x1a8] sm:$0xff]
          %v813 = vld [vmem:[%s364 + $0x1b0] sm:$0xff]
          %v814 = vld [vmem:[%s364 + $0x1b8] sm:$0xff]
          %v815 = vld [vmem:[%s364 + $0x1c0] sm:$0xff]
          %v816 = vld [vmem:[%s364 + $0x1c8] sm:$0xff]
          %v817 = vld [vmem:[%s364 + $0x1d0] sm:$0xff]
          %v818 = vld [vmem:[%s364 + $0x1d8] sm:$0xff]
          %v819 = vld [vmem:[%s364 + $0x1e0] sm:$0xff]
          %v820 = vld [vmem:[%s364 + $0x1e8] sm:$0xff]
          %v821 = vld [vmem:[%s364 + $0x1f0] sm:$0xff]
          %v822 = vld [vmem:[%s364 + $0x1f8] sm:$0xff]
          %v823 = vld [vmem:[%s364 + $0x200] sm:$0xff]
          %v824 = vld [vmem:[%s364 + $0x208] sm:$0xff]
          %v825 = vld [vmem:[%s364 + $0x210] sm:$0xff]
          %v826 = vld [vmem:[%s364 + $0x218] sm:$0xff]
          %v827 = vld [vmem:[%s364 + $0x220] sm:$0xff]
          %v828 = vld [vmem:[%s364 + $0x228] sm:$0xff]
          %v829 = vld [vmem:[%s364 + $0x230] sm:$0xff]
          %v830 = vld [vmem:[%s364 + $0x238] sm:$0xff]
          %v831 = vld [vmem:[%s364 + $0x240] sm:$0xff]
          %v832 = vld [vmem:[%s364 + $0x248] sm:$0xff]
          %v833 = vld [vmem:[%s364 + $0x250] sm:$0xff]
          %v834 = vld [vmem:[%s364 + $0x258] sm:$0xff]
          %v835 = vld [vmem:[%s364 + $0x260] sm:$0xff]
          %v836 = vld [vmem:[%s364 + $0x268] sm:$0xff]
          %v837 = vld [vmem:[%s364 + $0x270] sm:$0xff]
          %v838 = vld [vmem:[%s364 + $0x278] sm:$0xff]
          %v839 = vld [vmem:[%s364 + $0x280] sm:$0xff]
          %v840 = vld [vmem:[%s364 + $0x288] sm:$0xff]
          %v841 = vld [vmem:[%s364 + $0x290] sm:$0xff]
          %v842 = vld [vmem:[%s364 + $0x298] sm:$0xff]
          %v843 = vld [vmem:[%s364 + $0x2a0] sm:$0xff]
          %v844 = vld [vmem:[%s364 + $0x2a8] sm:$0xff]
          %v845 = vld [vmem:[%s364 + $0x2b0] sm:$0xff]
          %v846 = vld [vmem:[%s364 + $0x2b8] sm:$0xff]
          %v847 = vld [vmem:[%s364 + $0x2c0] sm:$0xff]
          %v848 = vld [vmem:[%s364 + $0x2c8] sm:$0xff]
          %v849 = vld [vmem:[%s364 + $0x2d0] sm:$0xff]
          %v850 = vld [vmem:[%s364 + $0x2d8] sm:$0xff]
          %v851 = vld [vmem:[%s364 + $0x2e0] sm:$0xff]
          %v852 = vld [vmem:[%s364 + $0x2e8] sm:$0xff]
          %v853 = vld [vmem:[%s364 + $0x2f0] sm:$0xff]
          %v854 = vld [vmem:[%s364 + $0x2f8] sm:$0xff]
          %v855 = vld [vmem:[%s364 + $0x300] sm:$0xff]
          %v856 = vld [vmem:[%s364 + $0x308] sm:$0xff]
          %v857 = vld [vmem:[%s364 + $0x310] sm:$0xff]
          %v858 = vld [vmem:[%s364 + $0x318] sm:$0xff]
          %v859 = vld [vmem:[%s364 + $0x320] sm:$0xff]
          %v860 = vld [vmem:[%s364 + $0x328] sm:$0xff]
          %v861 = vld [vmem:[%s364 + $0x330] sm:$0xff]
          %v862 = vld [vmem:[%s364 + $0x338] sm:$0xff]
          %v863 = vld [vmem:[%s364 + $0x340] sm:$0xff]
          %v864 = vld [vmem:[%s364 + $0x348] sm:$0xff]
          %v865 = vld [vmem:[%s364 + $0x350] sm:$0xff]
          %v866 = vld [vmem:[%s364 + $0x358] sm:$0xff]
          %v867 = vld [vmem:[%s364 + $0x360] sm:$0xff]
          %v868 = vld [vmem:[%s364 + $0x368] sm:$0xff]
          %v869 = vld [vmem:[%s364 + $0x370] sm:$0xff]
          %v870 = vld [vmem:[%s364 + $0x378] sm:$0xff]
          %v871 = vld [vmem:[%s364 + $0x380] sm:$0xff]
          %v872 = vld [vmem:[%s364 + $0x388] sm:$0xff]
          %v873 = vld [vmem:[%s364 + $0x390] sm:$0xff]
          %v874 = vld [vmem:[%s364 + $0x398] sm:$0xff]
          %v875 = vld [vmem:[%s364 + $0x3a0] sm:$0xff]
          %v876 = vld [vmem:[%s364 + $0x3a8] sm:$0xff]
          %v877 = vld [vmem:[%s364 + $0x3b0] sm:$0xff]
          %v878 = vld [vmem:[%s364 + $0x3b8] sm:$0xff]
          %v879 = vld [vmem:[%s364 + $0x3c0] sm:$0xff]
          %v880 = vld [vmem:[%s364 + $0x3c8] sm:$0xff]
          %v881 = vld [vmem:[%s364 + $0x3d0] sm:$0xff]
          %v882 = vld [vmem:[%s364 + $0x3d8] sm:$0xff]
          %v883 = vld [vmem:[%s364 + $0x3e0] sm:$0xff]
          %v884 = vld [vmem:[%s364 + $0x3e8] sm:$0xff]
          %v885 = vld [vmem:[%s364 + $0x3f0] sm:$0xff]
          %v886 = vld [vmem:[%s364 + $0x3f8] sm:$0xff]
          %v887 = vld [vmem:[%s374] sm:$0xff]
          %v889 = vperm.slane %v887, 0
          %v890 = vperm.slane %v887, 1
          %v891 = vperm.slane %v887, 2
          %v892 = vperm.slane %v887, 3
          %v893 = vperm.slane %v887, 4
          %v894 = vperm.slane %v887, 5
          %v895 = vperm.slane %v887, 6
          %v896 = vperm.slane %v887, 7
          %905 = vmatpush.msra.mxu0 %v879
          %906 = vmatpush.msra.mxu0 %v871
          %907 = vmatpush.msra.mxu0 %v863
          %908 = vmatpush.msra.mxu0 %v855
          %909 = vmatpush.msra.mxu0 %v847
          %910 = vmatpush.msra.mxu0 %v839
          %911 = vmatpush.msra.mxu0 %v831
          %912 = vmatpush.msra.mxu0 %v823
          %913 = vmatpush.msra.mxu0 %v815
          %914 = vmatpush.msra.mxu0 %v807
          %915 = vmatpush.msra.mxu0 %v799
          %916 = vmatpush.msra.mxu0 %v791
          %917 = vmatpush.msra.mxu0 %v783
          %918 = vmatpush.msra.mxu0 %v775
          %919 = vmatpush.msra.mxu0 %v767
          %920 = vmatpush.msra.mxu0 %v759
          %921 = vmatmul.f32.gmra.mxu0 %v758
          %v922 = vpop.f32.mrf.mxu0
          %v923 = vadd.f32 %v889, %v922
          %924 = vdwg.mxu0
          %925 = vmatpush.msra.mxu0 %v880
          %926 = vmatpush.msra.mxu0 %v872
          %927 = vmatpush.msra.mxu0 %v864
          %928 = vmatpush.msra.mxu0 %v856
          %929 = vmatpush.msra.mxu0 %v848
          %930 = vmatpush.msra.mxu0 %v840
          %931 = vmatpush.msra.mxu0 %v832
          %932 = vmatpush.msra.mxu0 %v824
          %933 = vmatpush.msra.mxu0 %v816
          %934 = vmatpush.msra.mxu0 %v808
          %935 = vmatpush.msra.mxu0 %v800
          %936 = vmatpush.msra.mxu0 %v792
          %937 = vmatpush.msra.mxu0 %v784
          %938 = vmatpush.msra.mxu0 %v776
          %939 = vmatpush.msra.mxu0 %v768
          %940 = vmatpush.msra.mxu0 %v760
          %941 = vmatmul.f32.gmra.mxu0 %v758
          %v942 = vpop.f32.mrf.mxu0
          %v943 = vadd.f32 %v890, %v942
          %944 = vdwg.mxu0
          %945 = vmatpush.msra.mxu0 %v881
          %946 = vmatpush.msra.mxu0 %v873
          %947 = vmatpush.msra.mxu0 %v865
          %948 = vmatpush.msra.mxu0 %v857
          %949 = vmatpush.msra.mxu0 %v849
          %950 = vmatpush.msra.mxu0 %v841
          %951 = vmatpush.msra.mxu0 %v833
          %952 = vmatpush.msra.mxu0 %v825
          %953 = vmatpush.msra.mxu0 %v817
          %954 = vmatpush.msra.mxu0 %v809
          %955 = vmatpush.msra.mxu0 %v801
          %956 = vmatpush.msra.mxu0 %v793
          %957 = vmatpush.msra.mxu0 %v785
          %958 = vmatpush.msra.mxu0 %v777
          %959 = vmatpush.msra.mxu0 %v769
          %960 = vmatpush.msra.mxu0 %v761
          %961 = vmatmul.f32.gmra.mxu0 %v758
          %v962 = vpop.f32.mrf.mxu0
          %v963 = vadd.f32 %v891, %v962
          %964 = vdwg.mxu0
          %965 = vmatpush.msra.mxu0 %v882
          %966 = vmatpush.msra.mxu0 %v874
          %967 = vmatpush.msra.mxu0 %v866
          %968 = vmatpush.msra.mxu0 %v858
          %969 = vmatpush.msra.mxu0 %v850
          %970 = vmatpush.msra.mxu0 %v842
          %971 = vmatpush.msra.mxu0 %v834
          %972 = vmatpush.msra.mxu0 %v826
          %973 = vmatpush.msra.mxu0 %v818
          %974 = vmatpush.msra.mxu0 %v810
          %975 = vmatpush.msra.mxu0 %v802
          %976 = vmatpush.msra.mxu0 %v794
          %977 = vmatpush.msra.mxu0 %v786
          %978 = vmatpush.msra.mxu0 %v778
          %979 = vmatpush.msra.mxu0 %v770
          %980 = vmatpush.msra.mxu0 %v762
          %981 = vmatmul.f32.gmra.mxu0 %v758
          %v982 = vpop.f32.mrf.mxu0
          %v983 = vadd.f32 %v892, %v982
          %984 = vdwg.mxu0
          %985 = vmatpush.msra.mxu0 %v883
          %986 = vmatpush.msra.mxu0 %v875
          %987 = vmatpush.msra.mxu0 %v867
          %988 = vmatpush.msra.mxu0 %v859
          %989 = vmatpush.msra.mxu0 %v851
          %990 = vmatpush.msra.mxu0 %v843
          %991 = vmatpush.msra.mxu0 %v835
          %992 = vmatpush.msra.mxu0 %v827
          %993 = vmatpush.msra.mxu0 %v819
          %994 = vmatpush.msra.mxu0 %v811
          %995 = vmatpush.msra.mxu0 %v803
          %996 = vmatpush.msra.mxu0 %v795
          %997 = vmatpush.msra.mxu0 %v787
          %998 = vmatpush.msra.mxu0 %v779
          %999 = vmatpush.msra.mxu0 %v771
          %1000 = vmatpush.msra.mxu0 %v763
          %1001 = vmatmul.f32.gmra.mxu0 %v758
          %v1002 = vpop.f32.mrf.mxu0
          %v1003 = vadd.f32 %v893, %v1002
          %1004 = vdwg.mxu0
          %1005 = vmatpush.msra.mxu0 %v884
          %1006 = vmatpush.msra.mxu0 %v876
          %1007 = vmatpush.msra.mxu0 %v868
          %1008 = vmatpush.msra.mxu0 %v860
          %1009 = vmatpush.msra.mxu0 %v852
          %1010 = vmatpush.msra.mxu0 %v844
          %1011 = vmatpush.msra.mxu0 %v836
          %1012 = vmatpush.msra.mxu0 %v828
          %1013 = vmatpush.msra.mxu0 %v820
          %1014 = vmatpush.msra.mxu0 %v812
          %1015 = vmatpush.msra.mxu0 %v804
          %1016 = vmatpush.msra.mxu0 %v796
          %1017 = vmatpush.msra.mxu0 %v788
          %1018 = vmatpush.msra.mxu0 %v780
          %1019 = vmatpush.msra.mxu0 %v772
          %1020 = vmatpush.msra.mxu0 %v764
          %1021 = vmatmul.f32.gmra.mxu0 %v758
          %v1022 = vpop.f32.mrf.mxu0
          %v1023 = vadd.f32 %v894, %v1022
          %1024 = vdwg.mxu0
          %1025 = vmatpush.msra.mxu0 %v885
          %1026 = vmatpush.msra.mxu0 %v877
          %1027 = vmatpush.msra.mxu0 %v869
          %1028 = vmatpush.msra.mxu0 %v861
          %1029 = vmatpush.msra.mxu0 %v853
          %1030 = vmatpush.msra.mxu0 %v845
          %1031 = vmatpush.msra.mxu0 %v837
          %1032 = vmatpush.msra.mxu0 %v829
          %1033 = vmatpush.msra.mxu0 %v821
          %1034 = vmatpush.msra.mxu0 %v813
          %1035 = vmatpush.msra.mxu0 %v805
          %1036 = vmatpush.msra.mxu0 %v797
          %1037 = vmatpush.msra.mxu0 %v789
          %1038 = vmatpush.msra.mxu0 %v781
          %1039 = vmatpush.msra.mxu0 %v773
          %1040 = vmatpush.msra.mxu0 %v765
          %1041 = vmatmul.f32.gmra.mxu0 %v758
          %v1042 = vpop.f32.mrf.mxu0
          %v1043 = vadd.f32 %v895, %v1042
          %1044 = vdwg.mxu0
          %1045 = vmatpush.msra.mxu0 %v886
          %1046 = vmatpush.msra.mxu0 %v878
          %1047 = vmatpush.msra.mxu0 %v870
          %1048 = vmatpush.msra.mxu0 %v862
          %1049 = vmatpush.msra.mxu0 %v854
          %1050 = vmatpush.msra.mxu0 %v846
          %1051 = vmatpush.msra.mxu0 %v838
          %1052 = vmatpush.msra.mxu0 %v830
          %1053 = vmatpush.msra.mxu0 %v822
          %1054 = vmatpush.msra.mxu0 %v814
          %1055 = vmatpush.msra.mxu0 %v806
          %1056 = vmatpush.msra.mxu0 %v798
          %1057 = vmatpush.msra.mxu0 %v790
          %1058 = vmatpush.msra.mxu0 %v782
          %1059 = vmatpush.msra.mxu0 %v774
          %1060 = vmatpush.msra.mxu0 %v766
          %1061 = vmatmul.f32.gmra.mxu0 %v758
          %v1062 = vpop.f32.mrf.mxu0
          %v1063 = vadd.f32 %v896, %v1062
          %1064 = vdwg.mxu0
          %1065 = vst [vmem:[%s416] sm:$0xff] %v923
          %1066 = vst [vmem:[%s416 + $0x8] sm:$0xff] %v943
          %1067 = vst [vmem:[%s416 + $0x10] sm:$0xff] %v963
          %1068 = vst [vmem:[%s416 + $0x18] sm:$0xff] %v983
          %1069 = vst [vmem:[%s416 + $0x20] sm:$0xff] %v1003
          %1070 = vst [vmem:[%s416 + $0x28] sm:$0xff] %v1023
          %1071 = vst [vmem:[%s416 + $0x30] sm:$0xff] %v1043
          %1072 = vst [vmem:[%s416 + $0x38] sm:$0xff] %v1063
        $region72: #{tpu_custom_call.1} parent=39 // pred_fallthru
          _
        %s1073 = sand.u32 %s203, 1
        %s1074 = scalar_lea.sflag [#allocation6], %s1073
        %s1075 = sand.u32 %s203, 1
        %s1076 = smul.addr %s1075, 64
        %s1077 = scalar_lea.vmem [#allocation12], %s1076
        // Predicated region
        $region73: #{tpu_custom_call.1} parent=39 // pred_check
          %p1078 = pneg %p213
        $region74: #{tpu_custom_call.1} parent=39 // pred_check_branch
          %1080 = sbr.rel (%p1078) target = $region76
        $region75: #{tpu_custom_call.1} parent=39 // pred_region
          %s1081 = ssub.s32 %s33, 1
          %p1082 = scmp.gt.s32.totalorder %s1081, 0
          %s1083 = scalar_select %p1082, %s1081, 0
          %s1084 = smul.u32 8, %s1083
          %1086 = vsyncadd %s1074, 0
          %s1087 = smul.addr %s32, 8
          %s1088 = sadd.s32 %s1084, %s1087
          %s1089 = smul.addr %s1088, 8
          %s1090 = scalar_lea.hbm %s5, %s1089
          %s1092 = sshll.u32 %s1077, 4
          %s1093 = int_to_ptr.vmem [resolvable:$true] %s1092
          %s1094 = sshll.u32 %s1090, 4
          %s1095 = int_to_ptr.hbm [resolvable:$true] %s1094
          %1097 = dma.vmem_to_hbm [thread:$0]  %s1093, 1024, %s1095, %s1074
        $region76: #{tpu_custom_call.1} parent=39 // pred_fallthru
          _
      $region40: #{tpu_custom_call.1} parent=5 // pred_fallthru
        _
      %p1098 = scmp.le.s32.totalorder 2, %s23
      // Predicated region
      $region77: #{tpu_custom_call.1} parent=5 // pred_check
        %p1099 = pneg %p1098
      $region78: #{tpu_custom_call.1} parent=5 // pred_check_branch
        %1101 = sbr.rel (%p1099) target = $region80
      $region79: #{tpu_custom_call.1} parent=5 // pred_region
        %s1102 = ssub.s32 %s23, 2
        // Predicated region
        $region81: #{tpu_custom_call.1} parent=79 // pred_check
          %p1103 = pneg %p219
        $region82: #{tpu_custom_call.1} parent=79 // pred_check_branch
          %1105 = sbr.rel (%p1103) target = $region84
        $region83: #{tpu_custom_call.1} parent=79 // pred_region
          %s1106 = sand.u32 %s204, 1
          %s1107 = scalar_lea.sflag [#allocation6], %s1106
          %s1108 = sand.u32 %s204, 1
          %s1109 = smul.addr %s1108, 64
          %s1110 = scalar_lea.vmem [#allocation12], %s1109
          %1112 = dma.done %s1107, 1024
        $region84: #{tpu_custom_call.1} parent=79 // pred_fallthru
          _
      $region80: #{tpu_custom_call.1} parent=5 // pred_fallthru
        _
    $region6: #{tpu_custom_call.1} parent=1 // loop_footer
      %s27 = sadd.s32 1, %s23
    $region7: #{tpu_custom_call.1} parent=1 // loop_footer_branch
      %22 = sbr.rel target = $region3
    $region8: #{tpu_custom_call.1} parent=1 // loop_exit
      _
    %1113 = vsyncpa [#allocation5], 1
    %s1114 = scalar_lea.sflag [#allocation5], 1
    %1115 = vsyncpa %s1114, 1
    %1116 = vsyncpa [#allocation8], 1
    %s1117 = scalar_lea.sflag [#allocation8], 1
    %1118 = vsyncpa %s1117, 1
    %1119 = vsyncpa [#allocation11], 1
    %s1120 = scalar_lea.sflag [#allocation11], 1
    %1121 = vsyncpa %s1120, 1
    %1122 = vsyncpa [#allocation6], 1
    %s1123 = scalar_lea.sflag [#allocation6], 1
    %1124 = vsyncpa %s1123, 1

</llo_original>
